<compile_context>
chip_gen: v5e
topology: v5e:2x2
jax: 0.10.0
libtpu: 0.0.40
codegen_flags: <defaults>
</compile_context>

<pallas_src>
import functools
from math import sqrt

import jax
import jax.numpy as jnp
from jax.experimental import pallas as pl
from jax.experimental.pallas import tpu as pltpu


_VMEM_LIMIT_BYTES = 48 * 1024 * 1024   # <= v7x 64 MiB physical; fine on v5e/v6e.


def _pick_tile(dim, target, align):
    """Largest multiple of `align` that divides `dim` and is <= target.

    Falls back to the full dimension, so a block is always either `align`-
    aligned or the whole axis (use align=128 for minor dims, 8 for second-minor
    dims to satisfy the (8, 128) BlockSpec constraint).
    """
    if dim <= target:
        return dim
    t = (min(target, dim) // align) * align
    while t >= align:
        if dim % t == 0:
            return t
        t -= align
    # TODO(synk): masked-tail / padded grid would bound VMEM for awkward
    # (prime-ish) huge dims; full-dim fallback is fine for the shapes used here.
    return dim


# ---------------------------------------------------------------------------
# Multi-head projection: P heads per grid step, K-reduced, f32 accumulator
# ---------------------------------------------------------------------------

def _head_proj_kernel(x_ref, w_ref, b_ref, o_ref, acc_ref, *, heads_per_step):
    """(tm, tk) activation tile reused for P heads: P MXU calls per step."""
    r = pl.program_id(2)

    @pl.when(r == 0)
    def _():
        acc_ref[...] = jnp.zeros_like(acc_ref)

    x = x_ref[...]                      # read the activation tile ONCE
    for p in range(heads_per_step):     # static unroll -> independent MXU calls
        acc_ref[p] += jnp.dot(x, w_ref[p], preferred_element_type=jnp.float32)

    @pl.when(r == pl.num_programs(2) - 1)
    def _():
        o_ref[...] = (acc_ref[...] + b_ref[...]).astype(o_ref.dtype)


def pallas_head_projection(x2d, w_heads, b_heads, *, out_dtype=jnp.bfloat16):
    """x2d: (M, Din); w_heads: (G, Din, dh) bf16; b_heads: (G, 1, dh) f32.

    Returns (G, M, dh) head-major so the attention kernel needs no transposes.
    G may be stacked q|k|v heads for the fused projection paths.
    """
    M, Din = x2d.shape
    G, _, dh = w_heads.shape

    # P heads per step: activation restreamed G/P times instead of G times.
    P = 1
    for cand in (4, 3, 2):
        if G % cand == 0:
            P = cand
            break
    tm = _pick_tile(M, 512, 8)        # big M tile -> weights restreamed M/tm times
    tk = _pick_tile(Din, 512, 128)

    x_bf = x2d.astype(jnp.bfloat16)
    grid = (G // P, M // tm, Din // tk)

    cost = pl.CostEstimate(
        flops=2 * G * M * Din * dh,
        transcendentals=0,
        bytes_accessed=(M * Din * 2) * (G // P)            # activation restream
                       + (G * Din * dh * 2) * (M // tm)    # weight restream
                       + G * dh * 4 + G * M * dh * 2,
    )
    kernel = functools.partial(_head_proj_kernel, heads_per_step=P)
    return pl.pallas_call(
        kernel,
        grid=grid,
        in_specs=[
            pl.BlockSpec((tm, tk), lambda g, i, k: (i, k)),
            pl.BlockSpec((P, tk, dh), lambda g, i, k: (g, k, 0)),
            pl.BlockSpec((P, 1, dh), lambda g, i, k: (g, 0, 0)),
        ],
        out_specs=pl.BlockSpec((P, tm, dh), lambda g, i, k: (g, i, 0)),
        out_shape=jax.ShapeDtypeStruct((G, M, dh), out_dtype),
        scratch_shapes=[pltpu.VMEM((P, tm, dh), jnp.float32)],
        compiler_params=pltpu.CompilerParams(
            dimension_semantics=("parallel", "parallel", "arbitrary"),
            vmem_limit_bytes=_VMEM_LIMIT_BYTES),
        cost_estimate=cost,
    )(x_bf, w_heads, b_heads)


# ---------------------------------------------------------------------------
# Shared tiled matmul(+bias) kernel (used by both output-projection variants)
# ---------------------------------------------------------------------------

def _matmul_bias_kernel(x_ref, w_ref, b_ref, o_ref, acc_ref):
    r = pl.program_id(2)

    @pl.when(r == 0)
    def _():
        acc_ref[...] = jnp.zeros_like(acc_ref)

    acc_ref[...] += jnp.dot(x_ref[...], w_ref[...],
                            preferred_element_type=jnp.float32)

    @pl.when(r == pl.num_programs(2) - 1)
    def _():
        o_ref[...] = (acc_ref[...] + b_ref[...]).astype(o_ref.dtype)


def pallas_out_projection_headreduce(x_heads, w_heads, bias, *,
                                     out_dtype=jnp.float32):
    """x_heads: (H, M, dv) bf16; w_heads: (H, dv, Dm) bf16; bias: (1, Dm) f32.

    concat_heads(x) @ W_out + b with the head axis as the grid reduction axis
    (no (M, H*dv) concat materialized).  Used when dv is not a multiple of 128.
    """
    H, M, dv = x_heads.shape
    Dm = w_heads.shape[2]
    tm = _pick_tile(M, 512, 8)
    tn = _pick_tile(Dm, 512, 128)

    cost = pl.CostEstimate(
        flops=2 * M * H * dv * Dm, transcendentals=0,
        bytes_accessed=H * M * dv * 2 * (Dm // tn) + H * dv * Dm * 2 * (M // tm)
                       + Dm * 4 + M * Dm * 4,
    )
    return pl.pallas_call(
        _matmul_bias_kernel,
        grid=(M // tm, Dm // tn, H),
        in_specs=[
            pl.BlockSpec((None, tm, dv), lambda i, j, h: (h, i, 0)),
            pl.BlockSpec((None, dv, tn), lambda i, j, h: (h, 0, j)),
            pl.BlockSpec((1, tn), lambda i, j, h: (0, j)),
        ],
        out_specs=pl.BlockSpec((tm, tn), lambda i, j, h: (i, j)),
        out_shape=jax.ShapeDtypeStruct((M, Dm), out_dtype),
        scratch_shapes=[pltpu.VMEM((tm, tn), jnp.float32)],
        compiler_params=pltpu.CompilerParams(
            dimension_semantics=("parallel", "parallel", "arbitrary"),
            vmem_limit_bytes=_VMEM_LIMIT_BYTES),
        cost_estimate=cost,
    )(x_heads, w_heads, bias)


def pallas_out_projection_gemm(x2d, w2d, bias, *, out_dtype=jnp.float32):
    """x2d: (M, K) bf16; w2d: (K, Dm) bf16; bias: (1, Dm) f32 -> (M, Dm).

    Plain full-depth GEMM for the lane-dense attention output (dv % 128 == 0):
    contraction depth tk per MXU call instead of H steps of depth dv.
    """
    M, K = x2d.shape
    Dm = w2d.shape[1]
    tm = _pick_tile(M, 512, 8)
    tn = _pick_tile(Dm, 512, 128)
    tk = _pick_tile(K, 512, 128)

    cost = pl.CostEstimate(
        flops=2 * M * K * Dm, transcendentals=0,
        bytes_accessed=M * K * 2 * (Dm // tn) + K * Dm * 2 * (M // tm)
                       + Dm * 4 + M * Dm * 4,
    )
    return pl.pallas_call(
        _matmul_bias_kernel,
        grid=(M // tm, Dm // tn, K // tk),
        in_specs=[
            pl.BlockSpec((tm, tk), lambda i, j, k: (i, k)),
            pl.BlockSpec((tk, tn), lambda i, j, k: (k, j)),
            pl.BlockSpec((1, tn), lambda i, j, k: (0, j)),
        ],
        out_specs=pl.BlockSpec((tm, tn), lambda i, j, k: (i, j)),
        out_shape=jax.ShapeDtypeStruct((M, Dm), out_dtype),
        scratch_shapes=[pltpu.VMEM((tm, tn), jnp.float32)],
        compiler_params=pltpu.CompilerParams(
            dimension_semantics=("parallel", "parallel", "arbitrary"),
            vmem_limit_bytes=_VMEM_LIMIT_BYTES),
        cost_estimate=cost,
    )(x2d, w2d, bias)


# ---------------------------------------------------------------------------
# Flash-style FullAttention: softmax(Q K^T / sqrt(dk)) V  (scale pre-folded)
# ---------------------------------------------------------------------------

def _flash_attention_kernel(q_ref, k_ref, v_ref, o_ref, m_ref, l_ref, acc_ref):
    """Online-softmax attention for one (batch, head, q-tile) over S tiles."""
    j = pl.program_id(3)

    @pl.when(j == 0)
    def _():
        m_ref[...] = jnp.full_like(m_ref, -jnp.inf)
        l_ref[...] = jnp.zeros_like(l_ref)
        acc_ref[...] = jnp.zeros_like(acc_ref)

    # 1/sqrt(dk) is folded into the Q projection weights at init (no per-tile
    # rescale).  Contract the head dims directly: no k.T / XLU transpose.
    s = jax.lax.dot_general(q_ref[...], k_ref[...],
                            dimension_numbers=(((1,), (1,)), ((), ())),
                            preferred_element_type=jnp.float32)       # (tq, ts)

    m_prev = m_ref[...]
    m_new = jnp.maximum(m_prev, jnp.max(s, axis=-1, keepdims=True))   # (tq, 1)
    alpha = jnp.exp(m_prev - m_new)
    p = jnp.exp(s - m_new)                                            # f32

    l_ref[...] = alpha * l_ref[...] + jnp.sum(p, axis=-1, keepdims=True)
    acc_ref[...] = alpha * acc_ref[...] + jnp.dot(
        p.astype(v_ref.dtype), v_ref[...], preferred_element_type=jnp.float32)
    m_ref[...] = m_new

    @pl.when(j == pl.num_programs(3) - 1)
    def _():
        inv_l = pl.reciprocal(l_ref[...], approx=True)                # EUP slot
        o_ref[...] = (acc_ref[...] * inv_l).astype(o_ref.dtype)


def pallas_flash_attention(q, k, v, *, n_heads, head_offsets=(0, 0, 0),
                           lane_dense_out=False):
    """Head-major flash attention.

    q: (Gq, B, L, dk), k: (Gk, B, S, dk), v: (Gv, B, S, dv) in bf16.
    `head_offsets` lets q/k/v all live in one fused (3H, B, L, d) array.
    With `lane_dense_out` (requires dv % 128 == 0) the output is a lane-dense
    (B, L, H*dv) slab; otherwise head-major (H, B, L, dv).
    """
    # TODO(synk): for d_head << 128 the per-head QK^T / PV matmuls still
    # underfill the v6e/v7x MXU; packing 2 heads per MXU call needs a
    # batched-dot layout and is not done here.
    _, B, L, dk = q.shape
    S = k.shape[2]
    dv = v.shape[3]
    H = n_heads
    qo, ko, vo = head_offsets

    if q.dtype != jnp.bfloat16:
        q = q.astype(jnp.bfloat16)
    if k.dtype != jnp.bfloat16:
        k = k.astype(jnp.bfloat16)
    if v.dtype != jnp.bfloat16:
        v = v.astype(jnp.bfloat16)

    tq = _pick_tile(L, 512, 8)      # bigger q tile -> fewer K/V restreams
    ts = _pick_tile(S, 1024, 8)

    cost = pl.CostEstimate(
        flops=2 * B * H * L * S * (dk + dv),
        transcendentals=B * H * L * S,
        bytes_accessed=2 * (B * H * (L // tq) * S * (dk + dv)   # K/V per q tile
                            + B * H * L * dk + B * H * L * dv),
    )

    # Deeper K/V pipelining only pays (and only allocates) when the S axis has
    # multiple steps: at small dk the per-step compute is short, so an extra
    # buffer helps hide the next K/V fetch.
    kv_kwargs = {}
    if S // ts > 2:
        kv_kwargs = dict(pipeline_mode=pl.Buffered(3))

    in_specs = [
        pl.BlockSpec((None, None, tq, dk), lambda b, h, i, j: (qo + h, b, i, 0)),
        pl.BlockSpec((None, None, ts, dk), lambda b, h, i, j: (ko + h, b, j, 0),
                     **kv_kwargs),
        pl.BlockSpec((None, None, ts, dv), lambda b, h, i, j: (vo + h, b, j, 0),
                     **kv_kwargs),
    ]
    if lane_dense_out:
        # Output block is dv lanes wide (multiple of 128): unmasked stores, and
        # the output projection can run as a plain full-depth GEMM.
        out_specs = pl.BlockSpec((None, tq, dv), lambda b, h, i, j: (b, i, h))
        out_shape = jax.ShapeDtypeStruct((B, L, H * dv), jnp.bfloat16)
    else:
        out_specs = pl.BlockSpec((None, None, tq, dv),
                                 lambda b, h, i, j: (h, b, i, 0))
        out_shape = jax.ShapeDtypeStruct((H, B, L, dv), jnp.bfloat16)

    return pl.pallas_call(
        _flash_attention_kernel,
        grid=(B, H, L // tq, S // ts),
        in_specs=in_specs,
        out_specs=out_specs,
        out_shape=out_shape,
        scratch_shapes=[
            pltpu.VMEM((tq, 1), jnp.float32),    # running max
            pltpu.VMEM((tq, 1), jnp.float32),    # running sum
            pltpu.VMEM((tq, dv), jnp.float32),   # output accumulator
        ],
        compiler_params=pltpu.CompilerParams(
            dimension_semantics=("parallel", "parallel", "parallel", "arbitrary"),
            vmem_limit_bytes=_VMEM_LIMIT_BYTES),
        cost_estimate=cost,
    )(q, k, v)


# ---------------------------------------------------------------------------
# AttentionLayer: params + forward
# ---------------------------------------------------------------------------

def init_attention_layer_params(key, d_model, n_heads, d_keys=None, d_values=None):
    """Parameters equivalent to the PyTorch AttentionLayer, stored head-major:
      proj weight (H, d_model, d_head):   w[h, i, j] == W_torch[h*d_head + j, i]
      out  weight (H, d_values, d_model): w[h, j, m] == W_torch_out[m, h*d_values + j]

    Kernel-ready tensors are cached once: bf16 weights, f32 biases (pre-shaped),
    the 1/sqrt(d_keys) softmax scale folded into the Q projection, and stacked
    Q|K|V / K|V weights for the fused projection paths.
    """
    d_keys = d_keys or d_model // n_heads
    d_values = d_values or d_model // n_heads
    H = n_heads

    def linear_init(k, fan_in, w_shape, b_shape):
        kw, kb = jax.random.split(k)
        bound = 1.0 / sqrt(fan_in)
        w = jax.random.uniform(kw, w_shape, jnp.float32, -bound, bound)
        b = jax.random.uniform(kb, b_shape, jnp.float32, -bound, bound)
        return w, b

    kq, kk, kv, ko = jax.random.split(key, 4)
    wq, bq = linear_init(kq, d_model, (H, d_model, d_keys), (H, d_keys))
    wk, bk = linear_init(kk, d_model, (H, d_model, d_keys), (H, d_keys))
    wv, bv = linear_init(kv, d_model, (H, d_model, d_values), (H, d_values))
    wo, bo = linear_init(ko, H * d_values, (H, d_values, d_model), (d_model,))

    params = {
        "q_proj": (wq, bq), "k_proj": (wk, bk), "v_proj": (wv, bv),
        "out_proj": (wo, bo),
        "n_heads": H, "d_keys": d_keys, "d_values": d_values,
    }

    # ---- kernel-ready cached tensors (cast / fold / stack ONCE) ----
    scale = 1.0 / sqrt(d_keys)              # fold softmax scale into Q proj
    wq_s, bq_s = wq * scale, bq * scale

    def pack(w, b):
        return (w.astype(jnp.bfloat16),
                b.astype(jnp.float32).reshape(b.shape[0], 1, b.shape[1]))

    params["q_bf16"] = pack(wq_s, bq_s)
    params["k_bf16"] = pack(wk, bk)
    params["v_bf16"] = pack(wv, bv)
    params["out_bf16"] = (wo.astype(jnp.bfloat16),
                          bo.astype(jnp.float32).reshape(1, d_model))
    params["out_flat_bf16"] = (
        wo.reshape(H * d_values, d_model).astype(jnp.bfloat16),
        bo.astype(jnp.float32).reshape(1, d_model))
    if d_keys == d_values:
        params["qkv_bf16"] = pack(jnp.concatenate([wq_s, wk, wv], axis=0),
                                  jnp.concatenate([bq_s, bk, bv], axis=0))
        params["kv_bf16"] = pack(jnp.concatenate([wk, wv], axis=0),
                                 jnp.concatenate([bk, bv], axis=0))
    return params


def attention_layer_forward(params, queries, keys, values, attn_mask=None,
                            tau=None, delta=None):
    """Forward matching AttentionLayer with FullAttention(mask_flag=False,
    output_attention=False) as the inner attention. Returns (out, None)."""
    # TODO(synk): attn_mask / tau / delta are accepted but unused, matching the
    # default FullAttention (mask_flag=False) which ignores them.
    B, L, d_model = queries.shape
    S = keys.shape[1]
    H, dk, dv = params["n_heads"], params["d_keys"], params["d_values"]

    # NOTE: `is` checks only pick the faster fused-projection path; callers
    # passing equal-but-distinct arrays get identical numbers via the slower
    # unfused path.
    if queries is keys and keys is values and "qkv_bf16" in params:
        w, b = params["qkv_bf16"]
        qkv = pallas_head_projection(queries.reshape(B * L, d_model), w, b)
        qkv = qkv.reshape(3 * H, B, L, dk)
        q_h = k_h = v_h = qkv
        offs = (0, H, 2 * H)
    elif keys is values and "kv_bf16" in params:
        q_h = pallas_head_projection(queries.reshape(B * L, d_model),
                                     *params["q_bf16"]).reshape(H, B, L, dk)
        kv = pallas_head_projection(keys.reshape(B * S, d_model),
                                    *params["kv_bf16"]).reshape(2 * H, B, S, dk)
        k_h = v_h = kv
        offs = (0, 0, H)
    else:
        q_h = pallas_head_projection(queries.reshape(B * L, d_model),
                                     *params["q_bf16"]).reshape(H, B, L, dk)
        k_h = pallas_head_projection(keys.reshape(B * S, d_model),
                                     *params["k_bf16"]).reshape(H, B, S, dk)
        v_h = pallas_head_projection(values.reshape(B * S, d_model),
                                     *params["v_bf16"]).reshape(H, B, S, dv)
        offs = (0, 0, 0)

    lane_dense = (dv % 128 == 0)
    o = pallas_flash_attention(q_h, k_h, v_h, n_heads=H, head_offsets=offs,
                               lane_dense_out=lane_dense)
    if lane_dense:
        out = pallas_out_projection_gemm(o.reshape(B * L, H * dv),
                                         *params["out_flat_bf16"])
    else:
        out = pallas_out_projection_headreduce(o.reshape(H, B * L, dv),
                                               *params["out_bf16"])
    attn = None   # FullAttention(output_attention=False) returns None
    return out.reshape(B, L, d_model), attn


# ---------------------------------------------------------------------------
# Example run + reference check
# ---------------------------------------------------------------------------

if __name__ == "__main__":
    def ref_forward(p, q_in, k_in, v_in):
        wq, bq = p["q_proj"]; wk, bk = p["k_proj"]; wv, bv = p["v_proj"]
        wo, bo = p["out_proj"]
        dk = p["d_keys"]
        q = jnp.einsum("bld,hdk->bhlk", q_in, wq) + bq[None, :, None, :]
        k = jnp.einsum("bsd,hdk->bhsk", k_in, wk) + bk[None, :, None, :]
        v = jnp.einsum("bsd,hdk->bhsk", v_in, wv) + bv[None, :, None, :]
        s = jnp.einsum("bhlk,bhsk->bhls", q, k) / sqrt(dk)
        a = jax.nn.softmax(s, axis=-1)
        o = jnp.einsum("bhls,bhsd->bhld", a, v)
        return jnp.einsum("bhld,hdm->blm", o, wo) + bo

    def check(name, out, ref, tol=5e-2):
        err = float(jnp.max(jnp.abs(out - ref)))
        scl = float(jnp.max(jnp.abs(ref))) + 1e-6
        assert err / scl < tol, f"{name} mismatch: abs={err} rel={err / scl}"

    key = jax.random.PRNGKey(0)
    kx, kq, kk, kv, kp, kp2, kx2 = jax.random.split(key, 7)

    # 1) Self-attention (d_head=8): fused QKV projection + head-reduce out-proj.
    B, L, S, d_model, n_heads = 2, 8, 16, 32, 4
    params = init_attention_layer_params(kp, d_model, n_heads)
    x = jax.random.normal(kx, (B, L, d_model), jnp.float32)
    out1, attn1 = attention_layer_forward(params, x, x, x, attn_mask=None)
    out1 = jax.block_until_ready(out1)
    assert out1.shape == (B, L, d_model), out1.shape
    assert attn1 is None
    check("self-attention", out1, ref_forward(params, x, x, x))

    # 2) Cross-attention: distinct Q/K/V inputs, different key length.
    q_in = jax.random.normal(kq, (B, L, d_model), jnp.float32)
    k_in = jax.random.normal(kk, (B, S, d_model), jnp.float32)
    v_in = jax.random.normal(kv, (B, S, d_model), jnp.float32)
    out2, _ = attention_layer_forward(params, q_in, k_in, v_in, attn_mask=None)
    out2 = jax.block_until_ready(out2)
    assert out2.shape == (B, L, d_model), out2.shape
    check("cross-attention", out2, ref_forward(params, q_in, k_in, v_in))

    # 3) d_head=128 config: exercises the lane-dense attention output and the
    #    full-depth output-projection GEMM path.
    d_model2, n_heads2 = 256, 2
    params2 = init_attention_layer_params(kp2, d_model2, n_heads2)
    x2 = jax.random.normal(kx2, (B, L, d_model2), jnp.float32)
    out3, _ = attention_layer_forward(params2, x2, x2, x2, attn_mask=None)
    out3 = jax.block_until_ready(out3)
    assert out3.shape == (B, L, d_model2), out3.shape
    check("lane-dense self-attention", out3, ref_forward(params2, x2, x2, x2))

    print("KERNEL_OK")
</pallas_src>

<mosaic_0001>
module attributes {stable_mosaic.version = 11 : i64} {
  func.func @_head_proj_kernel(%arg0: i32, %arg1: i32, %arg2: i32, %arg3: memref<16x32xbf16, #tpu.memory_space<vmem>>, %arg4: memref<4x32x8xbf16, #tpu.memory_space<vmem>>, %arg5: memref<4x1x8xf32, #tpu.memory_space<vmem>>, %arg6: memref<4x16x8xbf16, #tpu.memory_space<vmem>>, %arg7: memref<4x16x8xf32, #tpu.memory_space<vmem>>) attributes {dimension_semantics = [#tpu.dimension_semantics<parallel>, #tpu.dimension_semantics<parallel>, #tpu.dimension_semantics<arbitrary>], iteration_bounds = array<i64: 3, 1, 1>, scalar_prefetch = 0 : i64, scratch_operands = 1 : i64, tpu.core_type = #tpu.core_type<tc>, window_params = [{transform_indices = @transform_0, window_bounds = array<i64: 16, 32>}, {transform_indices = @transform_1, window_bounds = array<i64: 4, 32, 8>}, {transform_indices = @transform_2, window_bounds = array<i64: 4, 1, 8>}, {transform_indices = @transform_3, window_bounds = array<i64: 4, 16, 8>}]} {
    %c0_i32 = arith.constant 0 : i32
    %0 = arith.cmpi eq, %arg2, %c0_i32 : i32
    %1 = arith.extui %0 : i1 to i32
    %c0_i32_0 = arith.constant 0 : i32
    %2 = arith.cmpi ne, %1, %c0_i32_0 : i32
    scf.if %2 {
      %cst_40 = arith.constant 0.000000e+00 : f32
      %43 = vector.broadcast %cst_40 : f32 to vector<4x16x8xf32>
      %c0_41 = arith.constant 0 : index
      %c0_42 = arith.constant 0 : index
      %c0_43 = arith.constant 0 : index
      %44 = vector.load %arg7[%c0_41, %c0_42, %c0_43] : memref<4x16x8xf32, #tpu.memory_space<vmem>>, vector<4x16x8xf32>
      tpu.vector_store %arg7[%c0_41, %c0_42, %c0_43], %43 {strides = array<i32>} : memref<4x16x8xf32, #tpu.memory_space<vmem>>, vector<4x16x8xf32>,
    } else {
    }
    %c0 = arith.constant 0 : index
    %c0_1 = arith.constant 0 : index
    %3 = vector.load %arg3[%c0, %c0_1] : memref<16x32xbf16, #tpu.memory_space<vmem>>, vector<16x32xbf16>
    %c0_2 = arith.constant 0 : index
    %c0_3 = arith.constant 0 : index
    %c0_4 = arith.constant 0 : index
    %4 = vector.load %arg7[%c0_2, %c0_3, %c0_4] : memref<4x16x8xf32, #tpu.memory_space<vmem>>, vector<1x16x8xf32>
    %5 = vector.shape_cast %4 : vector<1x16x8xf32> to vector<16x8xf32>
    %c0_5 = arith.constant 0 : index
    %c0_6 = arith.constant 0 : index
    %c0_7 = arith.constant 0 : index
    %6 = vector.load %arg4[%c0_5, %c0_6, %c0_7] : memref<4x32x8xbf16, #tpu.memory_space<vmem>>, vector<1x32x8xbf16>
    %7 = vector.shape_cast %6 : vector<1x32x8xbf16> to vector<32x8xbf16>
    %cst = arith.constant dense<0.000000e+00> : vector<16x8xf32>
    %8 = tpu.matmul %3, %7, %cst {dimension_numbers = #tpu.dot_dimension_numbers<[1], [0], [0], [1], [0, 0, 1, 1], [], []>} : vector<16x32xbf16>, vector<32x8xbf16>, vector<16x8xf32> -> vector<16x8xf32>
    %9 = arith.addf %5, %8 : vector<16x8xf32>
    %c0_8 = arith.constant 0 : index
    %c0_9 = arith.constant 0 : index
    %c0_10 = arith.constant 0 : index
    %10 = vector.load %arg7[%c0_8, %c0_9, %c0_10] : memref<4x16x8xf32, #tpu.memory_space<vmem>>, vector<1x16x8xf32>
    %11 = vector.shape_cast %10 : vector<1x16x8xf32> to vector<16x8xf32>
    %12 = vector.shape_cast %9 : vector<16x8xf32> to vector<1x16x8xf32>
    tpu.vector_store %arg7[%c0_8, %c0_9, %c0_10], %12 {strides = array<i32>} : memref<4x16x8xf32, #tpu.memory_space<vmem>>, vector<1x16x8xf32>,
    %c1 = arith.constant 1 : index
    %c0_11 = arith.constant 0 : index
    %c0_12 = arith.constant 0 : index
    %13 = vector.load %arg7[%c1, %c0_11, %c0_12] : memref<4x16x8xf32, #tpu.memory_space<vmem>>, vector<1x16x8xf32>
    %14 = vector.shape_cast %13 : vector<1x16x8xf32> to vector<16x8xf32>
    %c1_13 = arith.constant 1 : index
    %c0_14 = arith.constant 0 : index
    %c0_15 = arith.constant 0 : index
    %15 = vector.load %arg4[%c1_13, %c0_14, %c0_15] : memref<4x32x8xbf16, #tpu.memory_space<vmem>>, vector<1x32x8xbf16>
    %16 = vector.shape_cast %15 : vector<1x32x8xbf16> to vector<32x8xbf16>
    %cst_16 = arith.constant dense<0.000000e+00> : vector<16x8xf32>
    %17 = tpu.matmul %3, %16, %cst_16 {dimension_numbers = #tpu.dot_dimension_numbers<[1], [0], [0], [1], [0, 0, 1, 1], [], []>} : vector<16x32xbf16>, vector<32x8xbf16>, vector<16x8xf32> -> vector<16x8xf32>
    %18 = arith.addf %14, %17 : vector<16x8xf32>
    %c1_17 = arith.constant 1 : index
    %c0_18 = arith.constant 0 : index
    %c0_19 = arith.constant 0 : index
    %19 = vector.load %arg7[%c1_17, %c0_18, %c0_19] : memref<4x16x8xf32, #tpu.memory_space<vmem>>, vector<1x16x8xf32>
    %20 = vector.shape_cast %19 : vector<1x16x8xf32> to vector<16x8xf32>
    %21 = vector.shape_cast %18 : vector<16x8xf32> to vector<1x16x8xf32>
    tpu.vector_store %arg7[%c1_17, %c0_18, %c0_19], %21 {strides = array<i32>} : memref<4x16x8xf32, #tpu.memory_space<vmem>>, vector<1x16x8xf32>,
    %c2 = arith.constant 2 : index
    %c0_20 = arith.constant 0 : index
    %c0_21 = arith.constant 0 : index
    %22 = vector.load %arg7[%c2, %c0_20, %c0_21] : memref<4x16x8xf32, #tpu.memory_space<vmem>>, vector<1x16x8xf32>
    %23 = vector.shape_cast %22 : vector<1x16x8xf32> to vector<16x8xf32>
    %c2_22 = arith.constant 2 : index
    %c0_23 = arith.constant 0 : index
    %c0_24 = arith.constant 0 : index
    %24 = vector.load %arg4[%c2_22, %c0_23, %c0_24] : memref<4x32x8xbf16, #tpu.memory_space<vmem>>, vector<1x32x8xbf16>
    %25 = vector.shape_cast %24 : vector<1x32x8xbf16> to vector<32x8xbf16>
    %cst_25 = arith.constant dense<0.000000e+00> : vector<16x8xf32>
    %26 = tpu.matmul %3, %25, %cst_25 {dimension_numbers = #tpu.dot_dimension_numbers<[1], [0], [0], [1], [0, 0, 1, 1], [], []>} : vector<16x32xbf16>, vector<32x8xbf16>, vector<16x8xf32> -> vector<16x8xf32>
    %27 = arith.addf %23, %26 : vector<16x8xf32>
    %c2_26 = arith.constant 2 : index
    %c0_27 = arith.constant 0 : index
    %c0_28 = arith.constant 0 : index
    %28 = vector.load %arg7[%c2_26, %c0_27, %c0_28] : memref<4x16x8xf32, #tpu.memory_space<vmem>>, vector<1x16x8xf32>
    %29 = vector.shape_cast %28 : vector<1x16x8xf32> to vector<16x8xf32>
    %30 = vector.shape_cast %27 : vector<16x8xf32> to vector<1x16x8xf32>
    tpu.vector_store %arg7[%c2_26, %c0_27, %c0_28], %30 {strides = array<i32>} : memref<4x16x8xf32, #tpu.memory_space<vmem>>, vector<1x16x8xf32>,
    %c3 = arith.constant 3 : index
    %c0_29 = arith.constant 0 : index
    %c0_30 = arith.constant 0 : index
    %31 = vector.load %arg7[%c3, %c0_29, %c0_30] : memref<4x16x8xf32, #tpu.memory_space<vmem>>, vector<1x16x8xf32>
    %32 = vector.shape_cast %31 : vector<1x16x8xf32> to vector<16x8xf32>
    %c3_31 = arith.constant 3 : index
    %c0_32 = arith.constant 0 : index
    %c0_33 = arith.constant 0 : index
    %33 = vector.load %arg4[%c3_31, %c0_32, %c0_33] : memref<4x32x8xbf16, #tpu.memory_space<vmem>>, vector<1x32x8xbf16>
    %34 = vector.shape_cast %33 : vector<1x32x8xbf16> to vector<32x8xbf16>
    %cst_34 = arith.constant dense<0.000000e+00> : vector<16x8xf32>
    %35 = tpu.matmul %3, %34, %cst_34 {dimension_numbers = #tpu.dot_dimension_numbers<[1], [0], [0], [1], [0, 0, 1, 1], [], []>} : vector<16x32xbf16>, vector<32x8xbf16>, vector<16x8xf32> -> vector<16x8xf32>
    %36 = arith.addf %32, %35 : vector<16x8xf32>
    %c3_35 = arith.constant 3 : index
    %c0_36 = arith.constant 0 : index
    %c0_37 = arith.constant 0 : index
    %37 = vector.load %arg7[%c3_35, %c0_36, %c0_37] : memref<4x16x8xf32, #tpu.memory_space<vmem>>, vector<1x16x8xf32>
    %38 = vector.shape_cast %37 : vector<1x16x8xf32> to vector<16x8xf32>
    %39 = vector.shape_cast %36 : vector<16x8xf32> to vector<1x16x8xf32>
    tpu.vector_store %arg7[%c3_35, %c0_36, %c0_37], %39 {strides = array<i32>} : memref<4x16x8xf32, #tpu.memory_space<vmem>>, vector<1x16x8xf32>,
    %c0_i32_38 = arith.constant 0 : i32
    %40 = arith.cmpi eq, %arg2, %c0_i32_38 : i32
    %41 = arith.extui %40 : i1 to i32
    %c0_i32_39 = arith.constant 0 : i32
    %42 = arith.cmpi ne, %41, %c0_i32_39 : i32
    scf.if %42 {
      %c0_40 = arith.constant 0 : index
      %c0_41 = arith.constant 0 : index
      %c0_42 = arith.constant 0 : index
      %43 = vector.load %arg7[%c0_40, %c0_41, %c0_42] : memref<4x16x8xf32, #tpu.memory_space<vmem>>, vector<4x16x8xf32>
      %c0_43 = arith.constant 0 : index
      %c0_44 = arith.constant 0 : index
      %c0_45 = arith.constant 0 : index
      %44 = vector.load %arg5[%c0_43, %c0_44, %c0_45] : memref<4x1x8xf32, #tpu.memory_space<vmem>>, vector<4x1x8xf32>
      %45 = vector.broadcast %44 : vector<4x1x8xf32> to vector<4x16x8xf32>
      %46 = arith.addf %43, %45 : vector<4x16x8xf32>
      %47 = arith.truncf %46 : vector<4x16x8xf32> to vector<4x16x8xbf16>
      %c0_46 = arith.constant 0 : index
      %c0_47 = arith.constant 0 : index
      %c0_48 = arith.constant 0 : index
      %48 = vector.load %arg6[%c0_46, %c0_47, %c0_48] : memref<4x16x8xbf16, #tpu.memory_space<vmem>>, vector<4x16x8xbf16>
      tpu.vector_store %arg6[%c0_46, %c0_47, %c0_48], %47 {strides = array<i32>} : memref<4x16x8xbf16, #tpu.memory_space<vmem>>, vector<4x16x8xbf16>,
    } else {
    }
    return
  }
  func.func @transform_0(%arg0: i32, %arg1: i32, %arg2: i32) -> (i32, i32) {
    %c0_i32 = arith.constant 0 : i32
    return %arg1, %arg2 : i32, i32
  }
  func.func @transform_1(%arg0: i32, %arg1: i32, %arg2: i32) -> (i32, i32, i32) {
    %c0_i32 = arith.constant 0 : i32
    %c0_i32_0 = arith.constant 0 : i32
    return %arg0, %arg2, %c0_i32 : i32, i32, i32
  }
  func.func @transform_2(%arg0: i32, %arg1: i32, %arg2: i32) -> (i32, i32, i32) {
    %c0_i32 = arith.constant 0 : i32
    %c0_i32_0 = arith.constant 0 : i32
    %c0_i32_1 = arith.constant 0 : i32
    return %arg0, %c0_i32, %c0_i32_0 : i32, i32, i32
  }
  func.func @transform_3(%arg0: i32, %arg1: i32, %arg2: i32) -> (i32, i32, i32) {
    %c0_i32 = arith.constant 0 : i32
    %c0_i32_0 = arith.constant 0 : i32
    return %arg0, %arg1, %c0_i32 : i32, i32, i32
  }
}

</mosaic_0001>

<llo_original>
// kernel: tpu_custom_call.1
$region0: #{tpu_custom_call.1}
  #allocation0 [shape = 'u32[]', space=smem, size = 0x4, offset = 0x4, fixed_abs, tag = 'smem constant byte address 0x4 - core index']
  #allocation1 [shape = 'u32[72,128]{1,0:T(1,128)}', space=vmem, size = 0x9000, scoped, tag = 'internal scratch']
  #allocation2 [shape = 'f32[4,16,8]{2,1,0:T(8,128)}', space=vmem, size = 0x8000, scoped, tag = 'scratch operand']
  %s0 = inlined_call_operand.vmem [shape: bf16[16,32], index: 0, kind: input, shape index: {}]
  %s1 = inlined_call_operand.vmem [shape: bf16[12,32,8], index: 1, kind: input, shape index: {}]
  %s2 = inlined_call_operand.vmem [shape: f32[12,1,8], index: 2, kind: input, shape index: {}]
  %s3 = inlined_call_operand.vmem [shape: bf16[12,16,8], index: 3, kind: output, shape index: {}]
  %s4 = sld [smem:[#allocation0]]
  $region53: #{tpu_custom_call.1} parent=0
    _
  %s6 = ssub.s32 1, %s4
  %s7 = scalar_select 0, %s6, %s4
  loop: start=0, step=1, limit=5
  $region2: #{tpu_custom_call.1} parent=0 // loop_pre_header
    _
  $region3: #{tpu_custom_call.1} parent=0 // loop_header
    %s9 = sphi 0, %s13
    %p10 = scmp.ge.s32.totalorder %s9, 5
    %s16 = sphi 0, %s35
    %s17 = sphi 0, %s31
    %s18 = sphi 0, %s27
    %s19 = sphi 0, %s16
    %s20 = sphi 0, %s17
    %s21 = sphi 0, %s18
    %s22 = sphi 0, %s19
    %s23 = sphi 0, %s20
    %s24 = sphi 0, %s21
    %s40 = sphi 0, %s42
    %s43 = sphi 0, %s40
    %s44 = sphi 0, %s43
    %s60 = sphi 0, %s44
    %s68 = sphi 0, %s70
    %s71 = sphi 0, %s68
    %s72 = sphi 0, %s71
    %s88 = sphi 0, %s72
    %s94 = sphi 0, %s96
    %s97 = sphi 0, %s94
    %s98 = sphi 0, %s97
    %s114 = sphi 0, %s98
    %s122 = sphi 0, %s124
    %s125 = sphi 0, %s122
    %s126 = sphi 0, %s125
    %s142 = sphi 0, %s126
  $region4: #{tpu_custom_call.1} parent=0 // loop_header_branch
    %12 = sbr.rel (%p10) target = $region8
  $region5: #{tpu_custom_call.1} parent=0 // loop_body
    %s14 = ssub.s32 %s9, 1
    %s15 = ssub.s32 %s9, 2
    %s25 = sadd.s32 1, %s18
    %p26 = scmp.ge.s32.totalorder %s25, 1
    %s27 = scalar_select %p26, 0, %s25
    %s28 = sadd.s32 1, %s17
    %s29 = scalar_select %p26, %s28, %s17
    %p30 = scmp.ge.s32.totalorder %s29, 1
    %s31 = scalar_select %p30, 0, %s29
    %s32 = sadd.s32 1, %s16
    %s33 = scalar_select %p30, %s32, %s16
    %p34 = scmp.ge.s32.totalorder %s33, 3
    %s35 = scalar_select %p34, 0, %s33
    %s36 = ssub.s32 %s17, %s31
    %s37 = ssub.s32 %s18, %s27
    %s38 = sor.u32 %s36, %s37
    %p39 = scmp.eq.s32.totalorder %s38, 0
    %s41 = sadd.s32 %s40, 1
    %s42 = scalar_select %p39, %s40, %s41
    %p45 = pneg %p39
    %p46 = scmp.eq.s32.totalorder %s9, 2
    %p47 = por %p45, %p46
    %p48 = scmp.ne.s32.totalorder %s40, %s43
    %p49 = scmp.eq.s32.totalorder %s9, 0
    %p50 = por %p48, %p49
    %p51 = scmp.ne.s32.totalorder %s40, %s43
    %p52 = scmp.eq.s32.totalorder %s14, 2
    %p53 = por %p51, %p52
    %p54 = scmp.ne.s32.totalorder %s43, %s44
    %p55 = scmp.eq.s32.totalorder %s14, 0
    %p56 = por %p54, %p55
    %p57 = scmp.ne.s32.totalorder %s43, %s44
    %p58 = scmp.eq.s32.totalorder %s15, 2
    %p59 = por %p57, %p58
    %p61 = scmp.ne.s32.totalorder %s44, %s60
    %p62 = scmp.eq.s32.totalorder %s15, 0
    %p63 = por %p61, %p62
    %s64 = ssub.s32 %s16, %s35
    %s65 = ssub.s32 %s18, %s27
    %s66 = sor.u32 %s64, %s65
    %p67 = scmp.eq.s32.totalorder %s66, 0
    %s69 = sadd.s32 %s68, 1
    %s70 = scalar_select %p67, %s68, %s69
    %p73 = pneg %p67
    %p74 = scmp.eq.s32.totalorder %s9, 2
    %p75 = por %p73, %p74
    %p76 = scmp.ne.s32.totalorder %s68, %s71
    %p77 = scmp.eq.s32.totalorder %s9, 0
    %p78 = por %p76, %p77
    %p79 = scmp.ne.s32.totalorder %s68, %s71
    %p80 = scmp.eq.s32.totalorder %s14, 2
    %p81 = por %p79, %p80
    %p82 = scmp.ne.s32.totalorder %s71, %s72
    %p83 = scmp.eq.s32.totalorder %s14, 0
    %p84 = por %p82, %p83
    %p85 = scmp.ne.s32.totalorder %s71, %s72
    %p86 = scmp.eq.s32.totalorder %s15, 2
    %p87 = por %p85, %p86
    %p89 = scmp.ne.s32.totalorder %s72, %s88
    %p90 = scmp.eq.s32.totalorder %s15, 0
    %p91 = por %p89, %p90
    %s92 = ssub.s32 %s16, %s35
    %p93 = scmp.eq.s32.totalorder %s92, 0
    %s95 = sadd.s32 %s94, 1
    %s96 = scalar_select %p93, %s94, %s95
    %p99 = pneg %p93
    %p100 = scmp.eq.s32.totalorder %s9, 2
    %p101 = por %p99, %p100
    %p102 = scmp.ne.s32.totalorder %s94, %s97
    %p103 = scmp.eq.s32.totalorder %s9, 0
    %p104 = por %p102, %p103
    %p105 = scmp.ne.s32.totalorder %s94, %s97
    %p106 = scmp.eq.s32.totalorder %s14, 2
    %p107 = por %p105, %p106
    %p108 = scmp.ne.s32.totalorder %s97, %s98
    %p109 = scmp.eq.s32.totalorder %s14, 0
    %p110 = por %p108, %p109
    %p111 = scmp.ne.s32.totalorder %s97, %s98
    %p112 = scmp.eq.s32.totalorder %s15, 2
    %p113 = por %p111, %p112
    %p115 = scmp.ne.s32.totalorder %s98, %s114
    %p116 = scmp.eq.s32.totalorder %s15, 0
    %p117 = por %p115, %p116
    %s118 = ssub.s32 %s16, %s35
    %s119 = ssub.s32 %s17, %s31
    %s120 = sor.u32 %s118, %s119
    %p121 = scmp.eq.s32.totalorder %s120, 0
    %s123 = sadd.s32 %s122, 1
    %s124 = scalar_select %p121, %s122, %s123
    %p127 = pneg %p121
    %p128 = scmp.eq.s32.totalorder %s9, 2
    %p129 = por %p127, %p128
    %p130 = scmp.ne.s32.totalorder %s122, %s125
    %p131 = scmp.eq.s32.totalorder %s9, 0
    %p132 = por %p130, %p131
    %p133 = scmp.ne.s32.totalorder %s122, %s125
    %p134 = scmp.eq.s32.totalorder %s14, 2
    %p135 = por %p133, %p134
    %p136 = scmp.ne.s32.totalorder %s125, %s126
    %p137 = scmp.eq.s32.totalorder %s14, 0
    %p138 = por %p136, %p137
    %p139 = scmp.ne.s32.totalorder %s125, %s126
    %p140 = scmp.eq.s32.totalorder %s15, 2
    %p141 = por %p139, %p140
    %p143 = scmp.ne.s32.totalorder %s126, %s142
    %p144 = scmp.eq.s32.totalorder %s15, 0
    %p145 = por %p143, %p144
    %p146 = scmp.le.s32.totalorder 1, %s9
    %p147 = scmp.lt.s32.totalorder %s9, 4
    %p148 = pnand %p146, %p147
    %p149 = pneg %p148
    // Predicated region
    $region9: #{tpu_custom_call.1} parent=5 // pred_check
      _
    $region10: #{tpu_custom_call.1} parent=5 // pred_check_branch
      %151 = sbr.rel (%p148) target = $region12
    $region11: #{tpu_custom_call.1} parent=5 // pred_region
      %s152 = ssub.s32 %s9, 1
      // Predicated region
      $region13: #{tpu_custom_call.1} parent=11 // pred_check
        %p153 = pneg %p56
      $region14: #{tpu_custom_call.1} parent=11 // pred_check_branch
        %155 = sbr.rel (%p153) target = $region16
      $region15: #{tpu_custom_call.1} parent=11 // pred_region
        %s156 = smul.u32 2, %s20
        %p157 = scmp.lt.s32.totalorder %s156, 1
        %s158 = scalar_select %p157, %s156, 1
        %p159 = scmp.lt.s32.totalorder %s21, 0
        %s160 = scalar_select %p159, %s21, 0
        %s161 = sadd.s32 %s160, %s158
        %s162 = smul.addr %s161, 4
        %s163 = scalar_lea.vmem %s0, %s162
        %s164 = smul.u32 2, %s20
      $region16: #{tpu_custom_call.1} parent=11 // pred_fallthru
        _
    $region12: #{tpu_custom_call.1} parent=5 // pred_fallthru
      _
    %p165 = scmp.lt.s32.totalorder %s9, 3
    // Predicated region
    $region17: #{tpu_custom_call.1} parent=5 // pred_check
      %p166 = pneg %p165
    $region18: #{tpu_custom_call.1} parent=5 // pred_check_branch
      %168 = sbr.rel (%p166) target = $region20
    $region19: #{tpu_custom_call.1} parent=5 // pred_region
      // Predicated region
      $region21: #{tpu_custom_call.1} parent=19 // pred_check
        %p169 = pneg %p78
      $region22: #{tpu_custom_call.1} parent=19 // pred_check_branch
        %171 = sbr.rel (%p169) target = $region24
      $region23: #{tpu_custom_call.1} parent=19 // pred_region
        %s172 = smul.u32 4, %s16
        %s173 = smul.u32 4, %s18
        %p174 = scmp.lt.s32.totalorder %s172, 11
        %s175 = scalar_select %p174, %s172, 11
        %p176 = scmp.lt.s32.totalorder %s173, 3
        %s177 = scalar_select %p176, %s173, 3
        %s178 = smul.addr %s175, 4
        %s179 = sadd.s32 %s177, %s178
        %s180 = smul.addr %s179, 4
        %s181 = scalar_lea.vmem %s1, %s180
        %s182 = smul.u32 4, %s16
        %s183 = smul.u32 4, %s18
      $region24: #{tpu_custom_call.1} parent=19 // pred_fallthru
        _
      // Predicated region
      $region25: #{tpu_custom_call.1} parent=19 // pred_check
        %p184 = pneg %p104
      $region26: #{tpu_custom_call.1} parent=19 // pred_check_branch
        %186 = sbr.rel (%p184) target = $region28
      $region27: #{tpu_custom_call.1} parent=19 // pred_region
        %s187 = smul.u32 4, %s16
        %p188 = scmp.lt.s32.totalorder %s187, 11
        %s189 = scalar_select %p188, %s187, 11
        %s190 = scalar_lea.vmem %s2, %s189
        %s191 = smul.u32 4, %s16
      $region28: #{tpu_custom_call.1} parent=19 // pred_fallthru
        _
    $region20: #{tpu_custom_call.1} parent=5 // pred_fallthru
      _
    %p192 = scmp.le.s32.totalorder 1, %s9
    %p193 = scmp.lt.s32.totalorder %s9, 4
    %p194 = pnand %p192, %p193
    %p195 = pneg %p194
    // Predicated region
    $region29: #{tpu_custom_call.1} parent=5 // pred_check
      _
    $region30: #{tpu_custom_call.1} parent=5 // pred_check_branch
      %197 = sbr.rel (%p194) target = $region32
    $region31: #{tpu_custom_call.1} parent=5 // pred_region
      %s198 = ssub.s32 %s9, 1
      %s199 = smul.u32 2, %s20
      %p200 = scmp.lt.s32.totalorder %s199, 1
      %s201 = scalar_select %p200, %s199, 1
      %p202 = scmp.lt.s32.totalorder %s21, 0
      %s203 = scalar_select %p202, %s21, 0
      %s204 = sadd.s32 %s203, %s201
      %s205 = smul.addr %s204, 4
      %s206 = scalar_lea.vmem %s0, %s205
      %p207 = pneg %p56
      %p208 = pneg %p53
      %s209 = smul.u32 4, %s19
      %s210 = smul.u32 4, %s21
      %p211 = scmp.lt.s32.totalorder %s209, 11
      %s212 = scalar_select %p211, %s209, 11
      %p213 = scmp.lt.s32.totalorder %s210, 3
      %s214 = scalar_select %p213, %s210, 3
      %s215 = smul.addr %s212, 4
      %s216 = sadd.s32 %s214, %s215
      %s217 = smul.addr %s216, 4
      %s218 = scalar_lea.vmem %s1, %s217
      %p219 = pneg %p84
      %p220 = pneg %p81
      %s221 = smul.u32 4, %s19
      %p222 = scmp.lt.s32.totalorder %s221, 11
      %s223 = scalar_select %p222, %s221, 11
      %s224 = scalar_lea.vmem %s2, %s223
      %p225 = pneg %p110
      %p226 = pneg %p107
      %p227 = pneg %p138
      %p228 = pneg %p135
      %s229 = smul.u32 4, %s19
      %s230 = smul.u32 2, %s20
      %p231 = scmp.lt.s32.totalorder %s229, 11
      %s232 = scalar_select %p231, %s229, 11
      %p233 = scmp.lt.s32.totalorder %s230, 1
      %s234 = scalar_select %p233, %s230, 1
      %s235 = smul.addr %s232, 2
      %s236 = sadd.s32 %s234, %s235
      %s237 = smul.addr %s236, 4
      %s238 = scalar_lea.vmem %s3, %s237
      %s239 = smul.u32 2, %s20
      %p240 = scmp.lt.s32.totalorder %s239, 1
      %s241 = scalar_select %p240, %s239, 1
      %p242 = scmp.lt.s32.totalorder %s21, 0
      %s243 = scalar_select %p242, %s21, 0
      %s244 = sadd.s32 %s243, %s241
      %s245 = smul.addr %s244, 4
      %s246 = scalar_lea.vmem %s0, %s245
      %s247 = smul.u32 2, %s20
      %s248 = smul.u32 4, %s19
      %s249 = smul.u32 4, %s21
      %p250 = scmp.lt.s32.totalorder %s248, 11
      %s251 = scalar_select %p250, %s248, 11
      %p252 = scmp.lt.s32.totalorder %s249, 3
      %s253 = scalar_select %p252, %s249, 3
      %s254 = smul.addr %s251, 4
      %s255 = sadd.s32 %s253, %s254
      %s256 = smul.addr %s255, 4
      %s257 = scalar_lea.vmem %s1, %s256
      %s258 = smul.u32 4, %s19
      %s259 = smul.u32 4, %s21
      %s260 = smul.u32 4, %s19
      %p261 = scmp.lt.s32.totalorder %s260, 11
      %s262 = scalar_select %p261, %s260, 11
      %s263 = scalar_lea.vmem %s2, %s262
      %s264 = smul.u32 4, %s19
      %s265 = smul.u32 4, %s19
      %s266 = smul.u32 2, %s20
      %p267 = scmp.lt.s32.totalorder %s265, 11
      %s268 = scalar_select %p267, %s265, 11
      %p269 = scmp.lt.s32.totalorder %s266, 1
      %s270 = scalar_select %p269, %s266, 1
      %s271 = smul.addr %s268, 2
      %s272 = sadd.s32 %s270, %s271
      %s273 = smul.addr %s272, 4
      %s274 = scalar_lea.vmem %s3, %s273
      %s275 = smul.u32 4, %s19
      %s276 = smul.u32 2, %s20
      %p278 = scmp.eq.s32.totalorder %s21, 0
      // Predicated region
      $region33: #{tpu_custom_call.1} parent=31 // pred_check
        %p279 = pneg %p278
      $region34: #{tpu_custom_call.1} parent=31 // pred_check_branch
        %281 = sbr.rel (%p279) target = $region36
      $region35: #{tpu_custom_call.1} parent=31 // pred_region
        %vm282 = vcmask 64512
        %283 = vst.msk [vmem:[#allocation2] sm:$0xff] %vm282, 0.0
        %284 = vst.msk [vmem:[#allocation2 + $0x8] sm:$0xff] %vm282, 0.0
        %285 = vst.msk [vmem:[#allocation2 + $0x10] sm:$0xff] %vm282, 0.0
        %286 = vst.msk [vmem:[#allocation2 + $0x18] sm:$0xff] %vm282, 0.0
        %287 = vst.msk [vmem:[#allocation2 + $0x20] sm:$0xff] %vm282, 0.0
        %288 = vst.msk [vmem:[#allocation2 + $0x28] sm:$0xff] %vm282, 0.0
        %289 = vst.msk [vmem:[#allocation2 + $0x30] sm:$0xff] %vm282, 0.0
        %290 = vst.msk [vmem:[#allocation2 + $0x38] sm:$0xff] %vm282, 0.0
      $region36: #{tpu_custom_call.1} parent=31 // pred_fallthru
        _
      %v291 = vld [vmem:[%s246] sm:$0xf]
      %v292 = vld [vmem:[%s246 + $0x4] sm:$0xf]
      %v293 = vld [vmem:[#allocation2] sm:$0xff]
      %v294 = vld [vmem:[#allocation2 + $0x8] sm:$0xff]
      %v295 = vld [vmem:[%s257] sm:$0xf]
      %v296 = vld [vmem:[%s257 + $0x4] sm:$0xf]
      %v297 = vld [vmem:[%s257 + $0x8] sm:$0xf]
      %v298 = vld [vmem:[%s257 + $0xc] sm:$0xf]
      %v301 = vunpack.c.l.b16 %v291
      %v302 = vunpack.c.l.b16 %v292
      %v303 = vpack.c.b16 %v302, %v301
      %v308 = vunpack.c.l.b16 %v295
      %v309 = vunpack.c.l.b16 %v296
      %v310 = vunpack.c.l.b16 %v297
      %v311 = vunpack.c.l.b16 %v298
      %v312 = vpack.c.b16 %v309, %v308
      %v313 = vpack.c.b16 %v311, %v310
      %vm316 = vcmask 261120
      %v318 = vsel %vm316, %v303, 0
      %320 = vmatpush.bf16.msra.mxu0 0
      %321 = vmatpush.bf16.msra.mxu0 0
      %322 = vmatpush.bf16.msra.mxu0 0
      %323 = vmatpush.bf16.msra.mxu0 0
      %324 = vmatpush.bf16.msra.mxu0 0
      %325 = vmatpush.bf16.msra.mxu0 0
      %326 = vmatpush.bf16.msra.mxu0 %v313
      %327 = vmatpush.bf16.msra.mxu0 %v312
      %328 = vmatmul.bf16.gmra.mxu0 %v318
      %v329 = vpop.f32.mrf.mxu0
      %v330 = vadd.f32 0.0, %v329
      %v331 = vpop.f32.mrf.mxu0
      %v332 = vadd.f32 0.0, %v331
      %333 = vdwg.mxu0
      %v334 = vadd.f32 %v293, %v330
      %v335 = vadd.f32 %v294, %v332
      %vm336 = vcmask 64512
      %337 = vst.msk [vmem:[#allocation2] sm:$0xff] %vm336, %v334
      %338 = vst.msk [vmem:[#allocation2 + $0x8] sm:$0xff] %vm336, %v335
      %s339 = scalar_lea.vmem [#allocation2], 16
      %v340 = vld [vmem:[%s339] sm:$0xff]
      %v341 = vld [vmem:[%s339 + $0x8] sm:$0xff]
      %s342 = scalar_lea.vmem %s257, 16
      %v343 = vld [vmem:[%s342] sm:$0xf]
      %v344 = vld [vmem:[%s342 + $0x4] sm:$0xf]
      %v345 = vld [vmem:[%s342 + $0x8] sm:$0xf]
      %v346 = vld [vmem:[%s342 + $0xc] sm:$0xf]
      %v351 = vunpack.c.l.b16 %v343
      %v352 = vunpack.c.l.b16 %v344
      %v353 = vunpack.c.l.b16 %v345
      %v354 = vunpack.c.l.b16 %v346
      %v355 = vpack.c.b16 %v352, %v351
      %v356 = vpack.c.b16 %v354, %v353
      %359 = vmatpush.bf16.msra.mxu0 0
      %360 = vmatpush.bf16.msra.mxu0 0
      %361 = vmatpush.bf16.msra.mxu0 0
      %362 = vmatpush.bf16.msra.mxu0 0
      %363 = vmatpush.bf16.msra.mxu0 0
      %364 = vmatpush.bf16.msra.mxu0 0
      %365 = vmatpush.bf16.msra.mxu0 %v356
      %366 = vmatpush.bf16.msra.mxu0 %v355
      %367 = vmatmul.bf16.gmra.mxu0 %v318
      %v368 = vpop.f32.mrf.mxu0
      %v369 = vadd.f32 0.0, %v368
      %v370 = vpop.f32.mrf.mxu0
      %v371 = vadd.f32 0.0, %v370
      %372 = vdwg.mxu0
      %v373 = vadd.f32 %v340, %v369
      %v374 = vadd.f32 %v341, %v371
      %375 = vst.msk [vmem:[%s339] sm:$0xff] %vm336, %v373
      %376 = vst.msk [vmem:[%s339 + $0x8] sm:$0xff] %vm336, %v374
      %s377 = scalar_lea.vmem [#allocation2], 32
      %v378 = vld [vmem:[%s377] sm:$0xff]
      %v379 = vld [vmem:[%s377 + $0x8] sm:$0xff]
      %s380 = scalar_lea.vmem %s257, 32
      %v381 = vld [vmem:[%s380] sm:$0xf]
      %v382 = vld [vmem:[%s380 + $0x4] sm:$0xf]
      %v383 = vld [vmem:[%s380 + $0x8] sm:$0xf]
      %v384 = vld [vmem:[%s380 + $0xc] sm:$0xf]
      %v389 = vunpack.c.l.b16 %v381
      %v390 = vunpack.c.l.b16 %v382
      %v391 = vunpack.c.l.b16 %v383
      %v392 = vunpack.c.l.b16 %v384
      %v393 = vpack.c.b16 %v390, %v389
      %v394 = vpack.c.b16 %v392, %v391
      %397 = vmatpush.bf16.msra.mxu0 0
      %398 = vmatpush.bf16.msra.mxu0 0
      %399 = vmatpush.bf16.msra.mxu0 0
      %400 = vmatpush.bf16.msra.mxu0 0
      %401 = vmatpush.bf16.msra.mxu0 0
      %402 = vmatpush.bf16.msra.mxu0 0
      %403 = vmatpush.bf16.msra.mxu0 %v394
      %404 = vmatpush.bf16.msra.mxu0 %v393
      %405 = vmatmul.bf16.gmra.mxu0 %v318
      %v406 = vpop.f32.mrf.mxu0
      %v407 = vadd.f32 0.0, %v406
      %v408 = vpop.f32.mrf.mxu0
      %v409 = vadd.f32 0.0, %v408
      %410 = vdwg.mxu0
      %v411 = vadd.f32 %v378, %v407
      %v412 = vadd.f32 %v379, %v409
      %413 = vst.msk [vmem:[%s377] sm:$0xff] %vm336, %v411
      %414 = vst.msk [vmem:[%s377 + $0x8] sm:$0xff] %vm336, %v412
      %s415 = scalar_lea.vmem [#allocation2], 48
      %v416 = vld [vmem:[%s415] sm:$0xff]
      %v417 = vld [vmem:[%s415 + $0x8] sm:$0xff]
      %s418 = scalar_lea.vmem %s257, 48
      %v419 = vld [vmem:[%s418] sm:$0xf]
      %v420 = vld [vmem:[%s418 + $0x4] sm:$0xf]
      %v421 = vld [vmem:[%s418 + $0x8] sm:$0xf]
      %v422 = vld [vmem:[%s418 + $0xc] sm:$0xf]
      %v427 = vunpack.c.l.b16 %v419
      %v428 = vunpack.c.l.b16 %v420
      %v429 = vunpack.c.l.b16 %v421
      %v430 = vunpack.c.l.b16 %v422
      %v431 = vpack.c.b16 %v428, %v427
      %v432 = vpack.c.b16 %v430, %v429
      %435 = vmatpush.bf16.msra.mxu0 0
      %436 = vmatpush.bf16.msra.mxu0 0
      %437 = vmatpush.bf16.msra.mxu0 0
      %438 = vmatpush.bf16.msra.mxu0 0
      %439 = vmatpush.bf16.msra.mxu0 0
      %440 = vmatpush.bf16.msra.mxu0 0
      %441 = vmatpush.bf16.msra.mxu0 %v432
      %442 = vmatpush.bf16.msra.mxu0 %v431
      %443 = vmatmul.bf16.gmra.mxu0 %v318
      %v444 = vpop.f32.mrf.mxu0
      %v445 = vadd.f32 0.0, %v444
      %v446 = vpop.f32.mrf.mxu0
      %v447 = vadd.f32 0.0, %v446
      %448 = vdwg.mxu0
      %v449 = vadd.f32 %v416, %v445
      %v450 = vadd.f32 %v417, %v447
      %451 = vst.msk [vmem:[%s415] sm:$0xff] %vm336, %v449
      %452 = vst.msk [vmem:[%s415 + $0x8] sm:$0xff] %vm336, %v450
      // Predicated region
      $region37: #{tpu_custom_call.1} parent=31 // pred_check
        %p453 = pneg %p278
      $region38: #{tpu_custom_call.1} parent=31 // pred_check_branch
        %455 = sbr.rel (%p453) target = $region40
      $region39: #{tpu_custom_call.1} parent=31 // pred_region
        %v456 = vld [vmem:[#allocation2] sm:$0xff]
        %v457 = vld [vmem:[#allocation2 + $0x8] sm:$0xff]
        %v458 = vld [vmem:[#allocation2 + $0x10] sm:$0xff]
        %v459 = vld [vmem:[#allocation2 + $0x18] sm:$0xff]
        %v460 = vld [vmem:[#allocation2 + $0x20] sm:$0xff]
        %v461 = vld [vmem:[#allocation2 + $0x28] sm:$0xff]
        %v462 = vld [vmem:[#allocation2 + $0x30] sm:$0xff]
        %v463 = vld [vmem:[#allocation2 + $0x38] sm:$0xff]
        %v464 = vld [vmem:[%s263] sm:$0x1]
        %v465 = vld [vmem:[%s263 + $0x1] sm:$0x1]
        %v466 = vld [vmem:[%s263 + $0x2] sm:$0x1]
        %v467 = vld [vmem:[%s263 + $0x3] sm:$0x1]
        %v472 = vperm.slane %v464, 0
        %v473 = vperm.slane %v465, 0
        %v474 = vperm.slane %v466, 0
        %v475 = vperm.slane %v467, 0
        %v480 = vadd.f32 %v456, %v472
        %v481 = vadd.f32 %v457, %v472
        %v482 = vadd.f32 %v458, %v473
        %v483 = vadd.f32 %v459, %v473
        %v484 = vadd.f32 %v460, %v474
        %v485 = vadd.f32 %v461, %v474
        %v486 = vadd.f32 %v462, %v475
        %v487 = vadd.f32 %v463, %v475
        %v488 = vpack.c.bf16 %v480, %v480
        %v489 = vpack.c.bf16 %v481, %v481
        %v490 = vpack.c.bf16 %v482, %v482
        %v491 = vpack.c.bf16 %v483, %v483
        %v492 = vpack.c.bf16 %v484, %v484
        %v493 = vpack.c.bf16 %v485, %v485
        %v494 = vpack.c.bf16 %v486, %v486
        %v495 = vpack.c.bf16 %v487, %v487
        %vm496 = vcmask 60416
        %497 = vst.msk [vmem:[%s274] sm:$0xf] %vm496, %v488
        %498 = vst.msk [vmem:[%s274 + $0x4] sm:$0xf] %vm496, %v489
        %499 = vst.msk [vmem:[%s274 + $0x8] sm:$0xf] %vm496, %v490
        %500 = vst.msk [vmem:[%s274 + $0xc] sm:$0xf] %vm496, %v491
        %501 = vst.msk [vmem:[%s274 + $0x10] sm:$0xf] %vm496, %v492
        %502 = vst.msk [vmem:[%s274 + $0x14] sm:$0xf] %vm496, %v493
        %503 = vst.msk [vmem:[%s274 + $0x18] sm:$0xf] %vm496, %v494
        %504 = vst.msk [vmem:[%s274 + $0x1c] sm:$0xf] %vm496, %v495
      $region40: #{tpu_custom_call.1} parent=31 // pred_fallthru
        _
      %s505 = smul.u32 4, %s19
      %s506 = smul.u32 2, %s20
      %p507 = scmp.lt.s32.totalorder %s505, 11
      %s508 = scalar_select %p507, %s505, 11
      %p509 = scmp.lt.s32.totalorder %s506, 1
      %s510 = scalar_select %p509, %s506, 1
      %s511 = smul.addr %s508, 2
      %s512 = sadd.s32 %s510, %s511
      %s513 = smul.addr %s512, 4
      %s514 = scalar_lea.vmem %s3, %s513
      // Predicated region
      $region41: #{tpu_custom_call.1} parent=31 // pred_check
        %p515 = pneg %p135
      $region42: #{tpu_custom_call.1} parent=31 // pred_check_branch
        %517 = sbr.rel (%p515) target = $region44
      $region43: #{tpu_custom_call.1} parent=31 // pred_region
        %s518 = smul.u32 4, %s19
        %s519 = smul.u32 2, %s20
      $region44: #{tpu_custom_call.1} parent=31 // pred_fallthru
        _
    $region32: #{tpu_custom_call.1} parent=5 // pred_fallthru
      _
    %p520 = scmp.le.s32.totalorder 2, %s9
    // Predicated region
    $region45: #{tpu_custom_call.1} parent=5 // pred_check
      %p521 = pneg %p520
    $region46: #{tpu_custom_call.1} parent=5 // pred_check_branch
      %523 = sbr.rel (%p521) target = $region48
    $region47: #{tpu_custom_call.1} parent=5 // pred_region
      %s524 = ssub.s32 %s9, 2
      // Predicated region
      $region49: #{tpu_custom_call.1} parent=47 // pred_check
        %p525 = pneg %p141
      $region50: #{tpu_custom_call.1} parent=47 // pred_check_branch
        %527 = sbr.rel (%p525) target = $region52
      $region51: #{tpu_custom_call.1} parent=47 // pred_region
        %s528 = smul.u32 4, %s22
        %s529 = smul.u32 2, %s23
        %p530 = scmp.lt.s32.totalorder %s528, 11
        %s531 = scalar_select %p530, %s528, 11
        %p532 = scmp.lt.s32.totalorder %s529, 1
        %s533 = scalar_select %p532, %s529, 1
        %s534 = smul.addr %s531, 2
        %s535 = sadd.s32 %s533, %s534
        %s536 = smul.addr %s535, 4
        %s537 = scalar_lea.vmem %s3, %s536
      $region52: #{tpu_custom_call.1} parent=47 // pred_fallthru
        _
    $region48: #{tpu_custom_call.1} parent=5 // pred_fallthru
      _
  $region6: #{tpu_custom_call.1} parent=0 // loop_footer
    %s13 = sadd.s32 1, %s9
  $region7: #{tpu_custom_call.1} parent=0 // loop_footer_branch
    %8 = sbr.rel target = $region3
  $region8: #{tpu_custom_call.1} parent=0 // loop_exit
    _

</llo_original>
